<compile_context>
chip_gen: v7x
topology: tpu7x:2x2x1
jax: 0.10.0
libtpu: 0.0.40
codegen_flags: <defaults>
</compile_context>

<pallas_src>
import jax
import jax.numpy as jnp
from jax import lax
from jax.experimental import pallas as pl
from jax.experimental.pallas import tpu as pltpu

EPS = 1e-5


def conv_stats_kernel(xc_ref, w_ref, y_ref, sum_ref, ssq_ref):
    # xc_ref:  [1, K, TM]     im2col tile for image n (K = 9*Cin, HW on lanes)
    # w_ref:   [Cout, K]      packed conv weights (tap-major, Cin-minor), resident
    # y_ref:   [1, Cout, TM]  conv output tile (pre-BN, compute dtype)
    # sum_ref: [1, Cout, 1]   per-image per-channel running sum   (accumulator)
    # ssq_ref: [1, Cout, 1]   per-image per-channel running sum^2 (accumulator)
    y = jnp.dot(w_ref[...], xc_ref[0], preferred_element_type=jnp.float32)
    y_ref[0] = y.astype(y_ref.dtype)

    @pl.when(pl.program_id(1) == 0)
    def _():
        sum_ref[...] = jnp.zeros_like(sum_ref)
        ssq_ref[...] = jnp.zeros_like(ssq_ref)

    # Stats from the f32 accumulator (before the narrowing cast above).
    sum_ref[0] += jnp.sum(y, axis=1, keepdims=True)
    ssq_ref[0] += jnp.sum(y * y, axis=1, keepdims=True)


def bn_relu_kernel(y_ref, scale_ref, shift_ref, o_ref):
    # y_ref: [1, Cout, TM2]; scale/shift: [Cout, 1]; o_ref: [1, Cout, TM2]
    y = y_ref[0].astype(jnp.float32)
    o_ref[0] = jnp.maximum(y * scale_ref[...] + shift_ref[...], 0.0).astype(o_ref.dtype)


def _round_up(x, m):
    return -(-x // m) * m


def _pick_tile_hw(hw, k, cout, bytes_per_elem, budget_bytes=24 << 20):
    """Largest lane tile (multiple of 128) along HW that fits the VMEM budget.

    Footprint model: double-buffered xc tile + double-buffered y tile + resident
    weights (counted twice as a safety margin).  Budget kept below the 32 MiB
    default scoped VMEM so the kernel is safe on v7x (64 MiB physical) without
    flag tuning; v5e/v6e have far more headroom.
    """
    cands = (2048, 1024, 512, 256, 128)

    def footprint(tm):
        return (2 * k * tm * bytes_per_elem
                + 2 * cout * tm * bytes_per_elem
                + 2 * cout * k * bytes_per_elem)

    feasible = [tm for tm in cands if footprint(tm) <= budget_bytes]
    if not feasible:
        return 128
    # Prefer the tile that minimizes padded HW (exact divisors first), then the
    # largest tile (amortizes the ~0.35 us per-grid-step overhead).
    return min(feasible, key=lambda tm: (_round_up(hw, tm), -tm))


def s_conv2d(x_nchw, w_oihw, bias, gamma, beta, *, compute_dtype=jnp.bfloat16):
    """Conv2d(3x3, s=1, p=1) + BatchNorm2d(training batch stats) + ReLU.

    NCHW in / NCHW out, matching the PyTorch S_Conv2d forward pass.
    `compute_dtype` controls matmul operands and the stored conv intermediate
    (bf16 default; accumulation and BN statistics are always f32).
    """
    N, Cin, H, W = x_nchw.shape
    Cout = w_oihw.shape[0]
    HW = H * W
    K = 9 * Cin
    # A pre-BN conv bias cancels exactly under training-mode BatchNorm (it shifts
    # the batch mean by the same constant), so it is intentionally unused here.
    del bias

    bpe = jnp.dtype(compute_dtype).itemsize
    TM = _pick_tile_hw(HW, K, Cout, bpe)
    HW_pad = _round_up(HW, TM)

    # ---- wrapper-side im2col: zero transposes, compute dtype from the start ----
    x_c = x_nchw.astype(compute_dtype)
    x_pad = jnp.pad(x_c, ((0, 0), (0, 0), (1, 1), (1, 1)))      # [N, Cin, H+2, W+2]
    taps = [x_pad[:, :, kh:kh + H, kw:kw + W].reshape(N, Cin, HW)
            for kh in range(3) for kw in range(3)]
    xc = jnp.concatenate(taps, axis=1)                           # [N, K, HW]
    if HW_pad != HW:
        # Zero columns -> zero conv outputs (no bias) -> zero stat contribution.
        xc = jnp.pad(xc, ((0, 0), (0, 0), (0, HW_pad - HW)))

    # Weights packed [Cout, K] with matching (tap-major, Cin-minor) row order.
    w_packed = (jnp.transpose(w_oihw, (0, 2, 3, 1))
                .reshape(Cout, K).astype(compute_dtype))

    # ---- pass 1: conv matmul + fused per-image BN statistics -------------------
    grid1 = (N, HW_pad // TM)
    y, ch_sum, ch_ssq = pl.pallas_call(
        conv_stats_kernel,
        out_shape=(jax.ShapeDtypeStruct((N, Cout, HW_pad), compute_dtype),
                   jax.ShapeDtypeStruct((N, Cout, 1), jnp.float32),
                   jax.ShapeDtypeStruct((N, Cout, 1), jnp.float32)),
        grid_spec=pltpu.PrefetchScalarGridSpec(
            num_scalar_prefetch=0,
            grid=grid1,
            in_specs=[
                pl.BlockSpec((1, K, TM), lambda n, t: (n, 0, t)),    # im2col tile
                pl.BlockSpec((Cout, K), lambda n, t: (0, 0)),        # weights
            ],
            out_specs=[
                pl.BlockSpec((1, Cout, TM), lambda n, t: (n, 0, t)),  # conv out
                pl.BlockSpec((1, Cout, 1), lambda n, t: (n, 0, 0)),   # sum
                pl.BlockSpec((1, Cout, 1), lambda n, t: (n, 0, 0)),   # sumsq
            ]),
        # Per-image stats accumulate across the HW-tile axis only -> images can
        # run in parallel (both v7x TensorCores), tiles are "arbitrary".
        compiler_params=pltpu.CompilerParams(
            dimension_semantics=("parallel", "arbitrary")),
    )(xc, w_packed)

    # ---- tiny [Cout]-sized BN finalize (plain JAX) ------------------------------
    cnt = jnp.float32(N * HW)                      # true count (padding is zero)
    total_sum = jnp.sum(ch_sum, axis=0)[:, 0]
    total_ssq = jnp.sum(ch_ssq, axis=0)[:, 0]
    mean = total_sum / cnt
    var = total_ssq / cnt - mean * mean            # biased variance (training)
    inv_std = lax.rsqrt(var + EPS)
    g = gamma.astype(jnp.float32)
    scale = (g * inv_std).reshape(Cout, 1)
    shift = (beta.astype(jnp.float32) - mean * g * inv_std).reshape(Cout, 1)

    # ---- pass 2: tiled affine + ReLU, writes the (N, Cout, HW) layout directly --
    TM2 = max(tm for tm in (2048, 1024, 512, 256, 128)
              if tm <= HW_pad and HW_pad % tm == 0)
    grid2 = (N, HW_pad // TM2)
    out = pl.pallas_call(
        bn_relu_kernel,
        out_shape=jax.ShapeDtypeStruct((N, Cout, HW_pad), jnp.float32),
        grid_spec=pltpu.PrefetchScalarGridSpec(
            num_scalar_prefetch=0,
            grid=grid2,
            in_specs=[
                pl.BlockSpec((1, Cout, TM2), lambda n, t: (n, 0, t)),
                pl.BlockSpec((Cout, 1), lambda n, t: (0, 0)),
                pl.BlockSpec((Cout, 1), lambda n, t: (0, 0)),
            ],
            out_specs=pl.BlockSpec((1, Cout, TM2), lambda n, t: (n, 0, t))),
        compiler_params=pltpu.CompilerParams(
            dimension_semantics=("parallel", "parallel")),
    )(y, scale, shift)

    if HW_pad != HW:
        out = out[:, :, :HW]
    return out.reshape(N, Cout, H, W)              # NCHW, no transpose needed


def s_conv2d_reference(x_nchw, w_oihw, bias, gamma, beta):
    y = lax.conv_general_dilated(
        x_nchw.astype(jnp.float32), w_oihw.astype(jnp.float32),
        window_strides=(1, 1), padding=((1, 1), (1, 1)),
        dimension_numbers=("NCHW", "OIHW", "NCHW"))
    y = y + bias.reshape(1, -1, 1, 1)
    mean = jnp.mean(y, axis=(0, 2, 3), keepdims=True)
    var = jnp.mean((y - mean) ** 2, axis=(0, 2, 3), keepdims=True)
    y_hat = (y - mean) / jnp.sqrt(var + EPS)
    out = gamma.reshape(1, -1, 1, 1) * y_hat + beta.reshape(1, -1, 1, 1)
    return jnp.maximum(out, 0.0)


if __name__ == "__main__":
    key = jax.random.PRNGKey(0)
    kx, kw, kb, kg, kbeta = jax.random.split(key, 5)

    N, Cin, Cout, H, W = 2, 4, 8, 16, 16
    x = jax.random.normal(kx, (N, Cin, H, W), dtype=jnp.float32)
    # Deterministic synthetic parameters (not loaded from a checkpoint).
    fan_in = Cin * 3 * 3
    bound = 1.0 / (fan_in ** 0.5)
    w = jax.random.uniform(kw, (Cout, Cin, 3, 3), jnp.float32, -bound, bound)
    b = jax.random.uniform(kb, (Cout,), jnp.float32, -bound, bound)
    gamma = 1.0 + 0.1 * jax.random.normal(kg, (Cout,), dtype=jnp.float32)
    beta = 0.1 * jax.random.normal(kbeta, (Cout,), dtype=jnp.float32)

    ref = jax.block_until_ready(s_conv2d_reference(x, w, b, gamma, beta))

    # Exact-semantics check: f32 operands / f32 intermediate vs f32 XLA reference.
    out_f32 = jax.block_until_ready(
        s_conv2d(x, w, b, gamma, beta, compute_dtype=jnp.float32))
    assert out_f32.shape == (N, Cout, H, W), out_f32.shape
    err_f32 = float(jnp.max(jnp.abs(out_f32 - ref)))
    assert err_f32 < 1e-3, f"f32 path max abs err {err_f32}"

    # Performance default: bf16 operands + bf16 conv intermediate, f32 accumulation
    # and f32 BN statistics.  Normalized outputs are O(1); bf16 operand/storage
    # rounding gives a few-percent worst-case abs error on outliers.
    out_bf16 = jax.block_until_ready(s_conv2d(x, w, b, gamma, beta))
    err_bf16 = float(jnp.max(jnp.abs(out_bf16 - ref)))
    assert err_bf16 < 6e-2, f"bf16 path max abs err {err_bf16}"

    print("KERNEL_OK")
</pallas_src>

<mosaic_0001>
module attributes {stable_mosaic.version = 11 : i64} {
  func.func @conv_stats_kernel(%arg0: i32, %arg1: i32, %arg2: memref<1x36x256xf32, #tpu.memory_space<vmem>>, %arg3: memref<8x36xf32, #tpu.memory_space<vmem>>, %arg4: memref<1x8x256xf32, #tpu.memory_space<vmem>>, %arg5: memref<1x8x1xf32, #tpu.memory_space<vmem>>, %arg6: memref<1x8x1xf32, #tpu.memory_space<vmem>>) attributes {dimension_semantics = [#tpu.dimension_semantics<parallel>, #tpu.dimension_semantics<arbitrary>], iteration_bounds = array<i64: 2, 1>, scalar_prefetch = 0 : i64, scratch_operands = 0 : i64, tpu.core_type = #tpu.core_type<tc>, window_params = [{transform_indices = @transform_0, window_bounds = array<i64: 1, 36, 256>}, {pipeline_mode = #tpu.pipeline_mode<synchronous>, transform_indices = @transform_1, window_bounds = array<i64: 8, 36>}, {transform_indices = @transform_2, window_bounds = array<i64: 1, 8, 256>}, {transform_indices = @transform_3, window_bounds = array<i64: 1, 8, 1>}, {transform_indices = @transform_4, window_bounds = array<i64: 1, 8, 1>}]} {
    %c0 = arith.constant 0 : index
    %c0_0 = arith.constant 0 : index
    %0 = vector.load %arg3[%c0, %c0_0] : memref<8x36xf32, #tpu.memory_space<vmem>>, vector<8x36xf32>
    %c0_1 = arith.constant 0 : index
    %c0_2 = arith.constant 0 : index
    %c0_3 = arith.constant 0 : index
    %1 = vector.load %arg2[%c0_1, %c0_2, %c0_3] : memref<1x36x256xf32, #tpu.memory_space<vmem>>, vector<1x36x256xf32>
    %2 = vector.shape_cast %1 : vector<1x36x256xf32> to vector<36x256xf32>
    %cst = arith.constant dense<0.000000e+00> : vector<8x256xf32>
    %3 = tpu.matmul %0, %2, %cst {dimension_numbers = #tpu.dot_dimension_numbers<[1], [0], [0], [1], [0, 0, 1, 1], [], []>} : vector<8x36xf32>, vector<36x256xf32>, vector<8x256xf32> -> vector<8x256xf32>
    %c0_4 = arith.constant 0 : index
    %c0_5 = arith.constant 0 : index
    %c0_6 = arith.constant 0 : index
    %4 = vector.load %arg4[%c0_4, %c0_5, %c0_6] : memref<1x8x256xf32, #tpu.memory_space<vmem>>, vector<1x8x256xf32>
    %5 = vector.shape_cast %4 : vector<1x8x256xf32> to vector<8x256xf32>
    %6 = vector.shape_cast %3 : vector<8x256xf32> to vector<1x8x256xf32>
    tpu.vector_store %arg4[%c0_4, %c0_5, %c0_6], %6 {strides = array<i32>} : memref<1x8x256xf32, #tpu.memory_space<vmem>>, vector<1x8x256xf32>,
    %c0_i32 = arith.constant 0 : i32
    %7 = arith.cmpi eq, %arg1, %c0_i32 : i32
    %8 = arith.extui %7 : i1 to i32
    %c0_i32_7 = arith.constant 0 : i32
    %9 = arith.cmpi ne, %8, %c0_i32_7 : i32
    scf.if %9 {
      %cst_22 = arith.constant 0.000000e+00 : f32
      %27 = vector.broadcast %cst_22 : f32 to vector<1x8x1xf32>
      %c0_23 = arith.constant 0 : index
      %c0_24 = arith.constant 0 : index
      %c0_25 = arith.constant 0 : index
      %28 = vector.load %arg5[%c0_23, %c0_24, %c0_25] : memref<1x8x1xf32, #tpu.memory_space<vmem>>, vector<1x8x1xf32>
      tpu.vector_store %arg5[%c0_23, %c0_24, %c0_25], %27 {strides = array<i32>} : memref<1x8x1xf32, #tpu.memory_space<vmem>>, vector<1x8x1xf32>,
      %cst_26 = arith.constant 0.000000e+00 : f32
      %29 = vector.broadcast %cst_26 : f32 to vector<1x8x1xf32>
      %c0_27 = arith.constant 0 : index
      %c0_28 = arith.constant 0 : index
      %c0_29 = arith.constant 0 : index
      %30 = vector.load %arg6[%c0_27, %c0_28, %c0_29] : memref<1x8x1xf32, #tpu.memory_space<vmem>>, vector<1x8x1xf32>
      tpu.vector_store %arg6[%c0_27, %c0_28, %c0_29], %29 {strides = array<i32>} : memref<1x8x1xf32, #tpu.memory_space<vmem>>, vector<1x8x1xf32>,
    } else {
    }
    %c0_8 = arith.constant 0 : index
    %c0_9 = arith.constant 0 : index
    %c0_10 = arith.constant 0 : index
    %10 = vector.load %arg5[%c0_8, %c0_9, %c0_10] : memref<1x8x1xf32, #tpu.memory_space<vmem>>, vector<1x8x1xf32>
    %11 = vector.shape_cast %10 : vector<1x8x1xf32> to vector<8x1xf32>
    %cst_11 = arith.constant dense<0.000000e+00> : vector<8xf32>
    %12 = vector.multi_reduction <add>, %3, %cst_11 [1] : vector<8x256xf32> to vector<8xf32>
    %13 = vector.shape_cast %12 : vector<8xf32> to vector<8x1xf32>
    %14 = arith.addf %11, %13 : vector<8x1xf32>
    %c0_12 = arith.constant 0 : index
    %c0_13 = arith.constant 0 : index
    %c0_14 = arith.constant 0 : index
    %15 = vector.load %arg5[%c0_12, %c0_13, %c0_14] : memref<1x8x1xf32, #tpu.memory_space<vmem>>, vector<1x8x1xf32>
    %16 = vector.shape_cast %15 : vector<1x8x1xf32> to vector<8x1xf32>
    %17 = vector.shape_cast %14 : vector<8x1xf32> to vector<1x8x1xf32>
    tpu.vector_store %arg5[%c0_12, %c0_13, %c0_14], %17 {strides = array<i32>} : memref<1x8x1xf32, #tpu.memory_space<vmem>>, vector<1x8x1xf32>,
    %c0_15 = arith.constant 0 : index
    %c0_16 = arith.constant 0 : index
    %c0_17 = arith.constant 0 : index
    %18 = vector.load %arg6[%c0_15, %c0_16, %c0_17] : memref<1x8x1xf32, #tpu.memory_space<vmem>>, vector<1x8x1xf32>
    %19 = vector.shape_cast %18 : vector<1x8x1xf32> to vector<8x1xf32>
    %20 = arith.mulf %3, %3 : vector<8x256xf32>
    %cst_18 = arith.constant dense<0.000000e+00> : vector<8xf32>
    %21 = vector.multi_reduction <add>, %20, %cst_18 [1] : vector<8x256xf32> to vector<8xf32>
    %22 = vector.shape_cast %21 : vector<8xf32> to vector<8x1xf32>
    %23 = arith.addf %19, %22 : vector<8x1xf32>
    %c0_19 = arith.constant 0 : index
    %c0_20 = arith.constant 0 : index
    %c0_21 = arith.constant 0 : index
    %24 = vector.load %arg6[%c0_19, %c0_20, %c0_21] : memref<1x8x1xf32, #tpu.memory_space<vmem>>, vector<1x8x1xf32>
    %25 = vector.shape_cast %24 : vector<1x8x1xf32> to vector<8x1xf32>
    %26 = vector.shape_cast %23 : vector<8x1xf32> to vector<1x8x1xf32>
    tpu.vector_store %arg6[%c0_19, %c0_20, %c0_21], %26 {strides = array<i32>} : memref<1x8x1xf32, #tpu.memory_space<vmem>>, vector<1x8x1xf32>,
    return
  }
  func.func @transform_0(%arg0: i32, %arg1: i32) -> (i32, i32, i32) {
    %c0_i32 = arith.constant 0 : i32
    %c0_i32_0 = arith.constant 0 : i32
    return %arg0, %c0_i32, %arg1 : i32, i32, i32
  }
  func.func @transform_1(%arg0: i32, %arg1: i32) -> (i32, i32) {
    %c0_i32 = arith.constant 0 : i32
    %c0_i32_0 = arith.constant 0 : i32
    %c0_i32_1 = arith.constant 0 : i32
    return %c0_i32, %c0_i32_0 : i32, i32
  }
  func.func @transform_2(%arg0: i32, %arg1: i32) -> (i32, i32, i32) {
    %c0_i32 = arith.constant 0 : i32
    %c0_i32_0 = arith.constant 0 : i32
    return %arg0, %c0_i32, %arg1 : i32, i32, i32
  }
  func.func @transform_3(%arg0: i32, %arg1: i32) -> (i32, i32, i32) {
    %c0_i32 = arith.constant 0 : i32
    %c0_i32_0 = arith.constant 0 : i32
    %c0_i32_1 = arith.constant 0 : i32
    return %arg0, %c0_i32, %c0_i32_0 : i32, i32, i32
  }
  func.func @transform_4(%arg0: i32, %arg1: i32) -> (i32, i32, i32) {
    %c0_i32 = arith.constant 0 : i32
    %c0_i32_0 = arith.constant 0 : i32
    %c0_i32_1 = arith.constant 0 : i32
    return %arg0, %c0_i32, %c0_i32_0 : i32, i32, i32
  }
}

</mosaic_0001>

<llo_original>
// kernel: tpu_custom_call.1
$region0: #{tpu_custom_call.1}
  #allocation0 [shape = 'u32[]', space=smem, size = 0x4, offset = 0x4, fixed_abs, tag = 'smem constant byte address 0x4 - core index']
  #allocation1 [shape = 'u32[144,128]{1,0:T(1,128)}', space=vmem, size = 0x12000, scoped, tag = 'internal scratch']
  %s0 = inlined_call_operand.vmem [shape: f32[2,36,256], index: 0, kind: input, shape index: {}]
  %s1 = inlined_call_operand.vmem [shape: f32[8,36], index: 1, kind: input, shape index: {}]
  %s2 = inlined_call_operand.hbm [shape: f32[2,8,256], index: 2, kind: output, shape index: {0}]
  %s3 = inlined_call_operand.vmem [shape: f32[2,8,1], index: 3, kind: output, shape index: {1}]
  %s4 = inlined_call_operand.vmem [shape: f32[2,8,1], index: 4, kind: output, shape index: {2}]
  %5 = xla_tuple %s2, %s3, %s4
  %s6 = sld [smem:[#allocation0]]
  $region61: #{tpu_custom_call.1} parent=0
    _
  %s8 = ssub.s32 1, %s6
  %s9 = scalar_select 0, %s8, %s6
  $region1: #{tpu_custom_call.1} parent=0
    #allocation2 [shape = 'u8[16384]{0}', space=vmem, size = 0x4000, scoped, tag = 'output window, operand 0']
    #allocation3 [shape = 's32[2]{0}', space=sflag, size = 0x8, scoped, tag = 'scoped memory for tpu_custom_call.1']
    %10 = vsyncpa [#allocation3], 0
    %s11 = scalar_lea.sflag [#allocation3], 1
    %12 = vsyncpa %s11, 0
    loop: start=0, step=1, limit=4
    $region2: #{tpu_custom_call.1} parent=1 // loop_pre_header
      _
    $region3: #{tpu_custom_call.1} parent=1 // loop_header
      %s14 = sphi 0, %s18
      %p15 = scmp.ge.s32.totalorder %s14, 4
      %s21 = sphi 0, %s33
      %s22 = sphi 0, %s29
      %s23 = sphi 0, %s21
      %s24 = sphi 0, %s22
      %s25 = sphi 0, %s23
      %s26 = sphi 0, %s24
      %s38 = sphi 0, %s40
      %s41 = sphi 0, %s38
      %s42 = sphi 0, %s41
      %s58 = sphi 0, %s42
      %s62 = sphi 0, %s62
      %s64 = sphi 0, %s62
      %s65 = sphi 0, %s64
      %s79 = sphi 0, %s65
      %s87 = sphi 0, %s89
      %s90 = sphi 0, %s87
      %s91 = sphi 0, %s90
      %s107 = sphi 0, %s91
      %s113 = sphi 0, %s115
      %s116 = sphi 0, %s113
      %s117 = sphi 0, %s116
      %s133 = sphi 0, %s117
      %s139 = sphi 0, %s141
      %s142 = sphi 0, %s139
      %s143 = sphi 0, %s142
      %s159 = sphi 0, %s143
    $region4: #{tpu_custom_call.1} parent=1 // loop_header_branch
      %17 = sbr.rel (%p15) target = $region8
    $region5: #{tpu_custom_call.1} parent=1 // loop_body
      %s19 = ssub.s32 %s14, 1
      %s20 = ssub.s32 %s14, 2
      %s27 = sadd.s32 1, %s22
      %p28 = scmp.ge.s32.totalorder %s27, 1
      %s29 = scalar_select %p28, 0, %s27
      %s30 = sadd.s32 1, %s21
      %s31 = scalar_select %p28, %s30, %s21
      %p32 = scmp.ge.s32.totalorder %s31, 2
      %s33 = scalar_select %p32, 0, %s31
      %s34 = ssub.s32 %s21, %s33
      %s35 = ssub.s32 %s22, %s29
      %s36 = sor.u32 %s34, %s35
      %p37 = scmp.eq.s32.totalorder %s36, 0
      %s39 = sadd.s32 %s38, 1
      %s40 = scalar_select %p37, %s38, %s39
      %p43 = pneg %p37
      %p44 = scmp.eq.s32.totalorder %s14, 1
      %p45 = por %p43, %p44
      %p46 = scmp.ne.s32.totalorder %s38, %s41
      %p47 = scmp.eq.s32.totalorder %s14, 0
      %p48 = por %p46, %p47
      %p49 = scmp.ne.s32.totalorder %s38, %s41
      %p50 = scmp.eq.s32.totalorder %s19, 1
      %p51 = por %p49, %p50
      %p52 = scmp.ne.s32.totalorder %s41, %s42
      %p53 = scmp.eq.s32.totalorder %s19, 0
      %p54 = por %p52, %p53
      %p55 = scmp.ne.s32.totalorder %s41, %s42
      %p56 = scmp.eq.s32.totalorder %s20, 1
      %p57 = por %p55, %p56
      %p59 = scmp.ne.s32.totalorder %s42, %s58
      %p60 = scmp.eq.s32.totalorder %s20, 0
      %p61 = por %p59, %p60
      %s63 = sadd.s32 %s62, 1
      %p66 = scmp.eq.s32.totalorder %s14, 1
      %p67 = scmp.ne.s32.totalorder %s62, %s64
      %p68 = scmp.eq.s32.totalorder %s14, 0
      %p69 = por %p67, %p68
      %p70 = scmp.ne.s32.totalorder %s62, %s64
      %p71 = scmp.eq.s32.totalorder %s19, 1
      %p72 = por %p70, %p71
      %p73 = scmp.ne.s32.totalorder %s64, %s65
      %p74 = scmp.eq.s32.totalorder %s19, 0
      %p75 = por %p73, %p74
      %p76 = scmp.ne.s32.totalorder %s64, %s65
      %p77 = scmp.eq.s32.totalorder %s20, 1
      %p78 = por %p76, %p77
      %p80 = scmp.ne.s32.totalorder %s65, %s79
      %p81 = scmp.eq.s32.totalorder %s20, 0
      %p82 = por %p80, %p81
      %s83 = ssub.s32 %s21, %s33
      %s84 = ssub.s32 %s22, %s29
      %s85 = sor.u32 %s83, %s84
      %p86 = scmp.eq.s32.totalorder %s85, 0
      %s88 = sadd.s32 %s87, 1
      %s89 = scalar_select %p86, %s87, %s88
      %p92 = pneg %p86
      %p93 = scmp.eq.s32.totalorder %s14, 1
      %p94 = por %p92, %p93
      %p95 = scmp.ne.s32.totalorder %s87, %s90
      %p96 = scmp.eq.s32.totalorder %s14, 0
      %p97 = por %p95, %p96
      %p98 = scmp.ne.s32.totalorder %s87, %s90
      %p99 = scmp.eq.s32.totalorder %s19, 1
      %p100 = por %p98, %p99
      %p101 = scmp.ne.s32.totalorder %s90, %s91
      %p102 = scmp.eq.s32.totalorder %s19, 0
      %p103 = por %p101, %p102
      %p104 = scmp.ne.s32.totalorder %s90, %s91
      %p105 = scmp.eq.s32.totalorder %s20, 1
      %p106 = por %p104, %p105
      %p108 = scmp.ne.s32.totalorder %s91, %s107
      %p109 = scmp.eq.s32.totalorder %s20, 0
      %p110 = por %p108, %p109
      %s111 = ssub.s32 %s21, %s33
      %p112 = scmp.eq.s32.totalorder %s111, 0
      %s114 = sadd.s32 %s113, 1
      %s115 = scalar_select %p112, %s113, %s114
      %p118 = pneg %p112
      %p119 = scmp.eq.s32.totalorder %s14, 1
      %p120 = por %p118, %p119
      %p121 = scmp.ne.s32.totalorder %s113, %s116
      %p122 = scmp.eq.s32.totalorder %s14, 0
      %p123 = por %p121, %p122
      %p124 = scmp.ne.s32.totalorder %s113, %s116
      %p125 = scmp.eq.s32.totalorder %s19, 1
      %p126 = por %p124, %p125
      %p127 = scmp.ne.s32.totalorder %s116, %s117
      %p128 = scmp.eq.s32.totalorder %s19, 0
      %p129 = por %p127, %p128
      %p130 = scmp.ne.s32.totalorder %s116, %s117
      %p131 = scmp.eq.s32.totalorder %s20, 1
      %p132 = por %p130, %p131
      %p134 = scmp.ne.s32.totalorder %s117, %s133
      %p135 = scmp.eq.s32.totalorder %s20, 0
      %p136 = por %p134, %p135
      %s137 = ssub.s32 %s21, %s33
      %p138 = scmp.eq.s32.totalorder %s137, 0
      %s140 = sadd.s32 %s139, 1
      %s141 = scalar_select %p138, %s139, %s140
      %p144 = pneg %p138
      %p145 = scmp.eq.s32.totalorder %s14, 1
      %p146 = por %p144, %p145
      %p147 = scmp.ne.s32.totalorder %s139, %s142
      %p148 = scmp.eq.s32.totalorder %s14, 0
      %p149 = por %p147, %p148
      %p150 = scmp.ne.s32.totalorder %s139, %s142
      %p151 = scmp.eq.s32.totalorder %s19, 1
      %p152 = por %p150, %p151
      %p153 = scmp.ne.s32.totalorder %s142, %s143
      %p154 = scmp.eq.s32.totalorder %s19, 0
      %p155 = por %p153, %p154
      %p156 = scmp.ne.s32.totalorder %s142, %s143
      %p157 = scmp.eq.s32.totalorder %s20, 1
      %p158 = por %p156, %p157
      %p160 = scmp.ne.s32.totalorder %s143, %s159
      %p161 = scmp.eq.s32.totalorder %s20, 0
      %p162 = por %p160, %p161
      %p163 = scmp.le.s32.totalorder 1, %s14
      %p164 = scmp.lt.s32.totalorder %s14, 3
      %p165 = pnand %p163, %p164
      %p166 = pneg %p165
      // Predicated region
      $region9: #{tpu_custom_call.1} parent=5 // pred_check
        _
      $region10: #{tpu_custom_call.1} parent=5 // pred_check_branch
        %168 = sbr.rel (%p165) target = $region12
      $region11: #{tpu_custom_call.1} parent=5 // pred_region
        %s169 = ssub.s32 %s14, 1
        // Predicated region
        $region13: #{tpu_custom_call.1} parent=11 // pred_check
          %p170 = pneg %p75
        $region14: #{tpu_custom_call.1} parent=11 // pred_check_branch
          %172 = sbr.rel (%p170) target = $region16
        $region15: #{tpu_custom_call.1} parent=11 // pred_region
          _
        $region16: #{tpu_custom_call.1} parent=11 // pred_fallthru
          _
      $region12: #{tpu_custom_call.1} parent=5 // pred_fallthru
        _
      %p173 = scmp.lt.s32.totalorder %s14, 2
      // Predicated region
      $region17: #{tpu_custom_call.1} parent=5 // pred_check
        %p174 = pneg %p173
      $region18: #{tpu_custom_call.1} parent=5 // pred_check_branch
        %176 = sbr.rel (%p174) target = $region20
      $region19: #{tpu_custom_call.1} parent=5 // pred_region
        // Predicated region
        $region21: #{tpu_custom_call.1} parent=19 // pred_check
          %p177 = pneg %p48
        $region22: #{tpu_custom_call.1} parent=19 // pred_check_branch
          %179 = sbr.rel (%p177) target = $region24
        $region23: #{tpu_custom_call.1} parent=19 // pred_region
          %s180 = smul.u32 2, %s22
          %p181 = scmp.lt.s32.totalorder %s21, 1
          %s182 = scalar_select %p181, %s21, 1
          %p183 = scmp.lt.s32.totalorder %s180, 1
          %s184 = scalar_select %p183, %s180, 1
          %s185 = smul.addr %s182, 10
          %s186 = sadd.s32 %s184, %s185
          %s187 = smul.addr %s186, 8
          %s188 = scalar_lea.vmem %s0, %s187
          %s189 = smul.u32 2, %s22
        $region24: #{tpu_custom_call.1} parent=19 // pred_fallthru
          _
      $region20: #{tpu_custom_call.1} parent=5 // pred_fallthru
        _
      %p190 = scmp.le.s32.totalorder 1, %s14
      %p191 = scmp.lt.s32.totalorder %s14, 3
      %p192 = pnand %p190, %p191
      %p193 = pneg %p192
      // Predicated region
      $region25: #{tpu_custom_call.1} parent=5 // pred_check
        _
      $region26: #{tpu_custom_call.1} parent=5 // pred_check_branch
        %195 = sbr.rel (%p192) target = $region28
      $region27: #{tpu_custom_call.1} parent=5 // pred_region
        %s196 = ssub.s32 %s14, 1
        %s197 = smul.u32 2, %s24
        %p198 = scmp.lt.s32.totalorder %s23, 1
        %s199 = scalar_select %p198, %s23, 1
        %p200 = scmp.lt.s32.totalorder %s197, 1
        %s201 = scalar_select %p200, %s197, 1
        %s202 = smul.addr %s199, 10
        %s203 = sadd.s32 %s201, %s202
        %s204 = smul.addr %s203, 8
        %s205 = scalar_lea.vmem %s0, %s204
        %p206 = pneg %p54
        %p207 = pneg %p51
        %p208 = pneg %p75
        %p209 = pneg %p72
        %p210 = pneg %p103
        %p211 = pneg %p100
        %s212 = sand.u32 %s90, 1
        %s213 = scalar_lea.sflag [#allocation3], %s212
        %s214 = sand.u32 %s90, 1
        %s215 = smul.addr %s214, 16
        %s216 = scalar_lea.vmem [#allocation2], %s215
        %p217 = pneg %p129
        %p218 = pneg %p126
        %p219 = scmp.lt.s32.totalorder %s23, 1
        %s220 = scalar_select %p219, %s23, 1
        %s221 = smul.addr %s220, 8
        %s222 = scalar_lea.vmem %s3, %s221
        %p223 = pneg %p155
        %p224 = pneg %p152
        %p225 = scmp.lt.s32.totalorder %s23, 1
        %s226 = scalar_select %p225, %s23, 1
        %s227 = smul.addr %s226, 8
        %s228 = scalar_lea.vmem %s4, %s227
        %s229 = smul.u32 2, %s24
        %p230 = scmp.lt.s32.totalorder %s23, 1
        %s231 = scalar_select %p230, %s23, 1
        %p232 = scmp.lt.s32.totalorder %s229, 1
        %s233 = scalar_select %p232, %s229, 1
        %s234 = smul.addr %s231, 10
        %s235 = sadd.s32 %s233, %s234
        %s236 = smul.addr %s235, 8
        %s237 = scalar_lea.vmem %s0, %s236
        %s238 = smul.u32 2, %s24
        %s239 = smul.u32 2, %s24
        %p240 = scmp.lt.s32.totalorder %s23, 1
        %s241 = scalar_select %p240, %s23, 1
        %s242 = smul.addr %s241, 8
        %s243 = scalar_lea.vmem %s3, %s242
        %p244 = scmp.lt.s32.totalorder %s23, 1
        %s245 = scalar_select %p244, %s23, 1
        %s246 = smul.addr %s245, 8
        %s247 = scalar_lea.vmem %s4, %s246
        %v248 = vld [vmem:[%s1] sm:$0xff]
        %v249 = vld [vmem:[%s237] sm:$0xff]
        %v250 = vld [vmem:[%s237 + $0x8] sm:$0xff]
        %v251 = vld [vmem:[%s237 + $0x10] sm:$0xff]
        %v252 = vld [vmem:[%s237 + $0x18] sm:$0xff]
        %v253 = vld [vmem:[%s237 + $0x20] sm:$0xff]
        %v254 = vld [vmem:[%s237 + $0x28] sm:$0xff]
        %v255 = vld [vmem:[%s237 + $0x30] sm:$0xff]
        %v256 = vld [vmem:[%s237 + $0x38] sm:$0xff]
        %v257 = vld [vmem:[%s237 + $0x40] sm:$0xf]
        %v258 = vld [vmem:[%s237 + $0x48] sm:$0xf]
        %vm259 = vcmask 293888
        %v261 = vsel %vm259, %v248, 0
        %vm263 = vcmask 1043456
        %v265 = vsel %vm263, %v257, 0
        %v268 = vsel %vm263, %v258, 0
        %270 = vmatprep.subr.mxu0 %v250
        %271 = vmatpush1.msra.mxu0 %v249
        %272 = vmatprep.subr.mxu0 %v252
        %273 = vmatpush1.msra.mxu0 %v251
        %274 = vmatprep.subr.mxu0 %v254
        %275 = vmatpush1.msra.mxu0 %v253
        %276 = vmatprep.subr.mxu0 %v256
        %277 = vmatpush1.msra.mxu0 %v255
        %278 = vmatprep.subr.mxu0 %v268
        %279 = vmatpush1.msra.mxu0 %v265
        %280 = vmatprep.subr.mxu0 0.0
        %281 = vmatpush1.msra.mxu0 0.0
        %282 = vmatprep.subr.mxu0 0.0
        %283 = vmatpush1.msra.mxu0 0.0
        %284 = vmatprep.subr.mxu0 0.0
        %285 = vmatpush1.msra.mxu0 0.0
        %286 = vmatprep.subr.mxu0 0.0
        %287 = vmatpush1.msra.mxu0 0.0
        %288 = vmatprep.subr.mxu0 0.0
        %289 = vmatpush1.msra.mxu0 0.0
        %290 = vmatprep.subr.mxu0 0.0
        %291 = vmatpush1.msra.mxu0 0.0
        %292 = vmatprep.subr.mxu0 0.0
        %293 = vmatpush1.msra.mxu0 0.0
        %294 = vmatprep.subr.mxu0 0.0
        %295 = vmatpush1.msra.mxu0 0.0
        %296 = vmatprep.subr.mxu0 0.0
        %297 = vmatpush1.msra.mxu0 0.0
        %298 = vmatprep.subr.mxu0 0.0
        %299 = vmatpush1.msra.mxu0 0.0
        %300 = vmatprep.subr.mxu0 0.0
        %301 = vmatpush1.msra.mxu0 0.0
        %302 = vmatprep.subr.mxu0 0.0
        %303 = vmatpush1.msra.mxu0 0.0
        %304 = vmatprep.subr.mxu0 0.0
        %305 = vmatpush1.msra.mxu0 0.0
        %306 = vmatprep.subr.mxu0 0.0
        %307 = vmatpush1.msra.mxu0 0.0
        %308 = vmatprep.subr.mxu0 0.0
        %309 = vmatpush1.msra.mxu0 0.0
        %310 = vmatprep.subr.mxu0 0.0
        %311 = vmatpush1.msra.mxu0 0.0
        %312 = vmatprep.subr.mxu0 0.0
        %313 = vmatpush1.msra.mxu0 0.0
        %314 = vmatprep.subr.mxu0 0.0
        %315 = vmatpush1.msra.mxu0 0.0
        %316 = vmatprep.subr.mxu0 0.0
        %317 = vmatpush1.msra.mxu0 0.0
        %318 = vmatprep.subr.mxu0 0.0
        %319 = vmatpush1.msra.mxu0 0.0
        %320 = vmatprep.subr.mxu0 0.0
        %321 = vmatpush1.msra.mxu0 0.0
        %322 = vmatprep.subr.mxu0 0.0
        %323 = vmatpush1.msra.mxu0 0.0
        %324 = vmatprep.subr.mxu0 0.0
        %325 = vmatpush1.msra.mxu0 0.0
        %326 = vmatprep.subr.mxu0 0.0
        %327 = vmatpush1.msra.mxu0 0.0
        %328 = vmatprep.subr.mxu0 0.0
        %329 = vmatpush1.msra.mxu0 0.0
        %330 = vmatprep.subr.mxu0 0.0
        %331 = vmatpush1.msra.mxu0 0.0
        %332 = vmatprep.subr.mxu0 0.0
        %333 = vmatpush1.msra.mxu0 0.0
        %334 = vmatprep.mubr.f32.mxu0 0.0
        %335 = vmatmul.mubr.f32.gmra.mrb[0].mxu0 %v261
        %v336 = vpop.f32.mrb[0].mxu0
        %v337 = vadd.f32 0.0, %v336
        %v338 = vpop.f32.mrb[0].mxu0
        %v339 = vadd.f32 0.0, %v338
        %340 = vdwg.mxu0
        %341 = vst [vmem:[%s216] sm:$0xff] %v337
        %342 = vst [vmem:[%s216 + $0x8] sm:$0xff] %v339
        %p343 = scmp.eq.s32.totalorder %s24, 0
        // Predicated region
        $region29: #{tpu_custom_call.1} parent=27 // pred_check
          %p344 = pneg %p343
        $region30: #{tpu_custom_call.1} parent=27 // pred_check_branch
          %346 = sbr.rel (%p344) target = $region32
        $region31: #{tpu_custom_call.1} parent=27 // pred_region
          %vm347 = vcmask 7168
          %348 = vst.msk [vmem:[%s243] sm:$0xff] %vm347, 0.0
          %349 = vst.msk [vmem:[%s247] sm:$0xff] %vm347, 0.0
        $region32: #{tpu_custom_call.1} parent=27 // pred_fallthru
          _
        %v350 = vld [vmem:[%s243] sm:$0xff]
        %v351 = vadd.f32 %v337, %v339
        %352 = vadd.xlane.f32.xlu0 %v351
        %v353 = vpop.xlane.xlu0 %352
        %v354 = vadd.f32 %v350, %v353
        %vm355 = vcmask 7168
        %356 = vst.msk [vmem:[%s243] sm:$0xff] %vm355, %v354
        %v357 = vld [vmem:[%s247] sm:$0xff]
        %v358 = vmul.f32 %v337, %v337
        %v359 = vmul.f32 %v339, %v339
        %v360 = vadd.f32 %v358, %v359
        %361 = vadd.xlane.f32.xlu0 %v360
        %v362 = vpop.xlane.xlu0 %361
        %v363 = vadd.f32 %v357, %v362
        %364 = vst.msk [vmem:[%s247] sm:$0xff] %vm355, %v363
        %s365 = sand.u32 %s90, 1
        %s366 = scalar_lea.sflag [#allocation3], %s365
        %s367 = sand.u32 %s90, 1
        %s368 = smul.addr %s367, 16
        %s369 = scalar_lea.vmem [#allocation2], %s368
        %p370 = scmp.lt.s32.totalorder %s23, 1
        %s371 = scalar_select %p370, %s23, 1
        %s372 = smul.addr %s371, 8
        %s373 = scalar_lea.vmem %s3, %s372
        %p374 = scmp.lt.s32.totalorder %s23, 1
        %s375 = scalar_select %p374, %s23, 1
        %s376 = smul.addr %s375, 8
        %s377 = scalar_lea.vmem %s4, %s376
        // Predicated region
        $region33: #{tpu_custom_call.1} parent=27 // pred_check
          %p378 = pneg %p100
        $region34: #{tpu_custom_call.1} parent=27 // pred_check_branch
          %380 = sbr.rel (%p378) target = $region36
        $region35: #{tpu_custom_call.1} parent=27 // pred_region
          %s381 = smul.u32 2, %s24
          %s383 = ssub.s32 256, 256
          %384 = vsyncadd %s366, %s383
          %s385 = smul.addr %s23, 2
          %s386 = sadd.s32 %s381, %s385
          %s387 = smul.addr %s386, 128
          %s388 = scalar_lea.hbm %s2, %s387
          %s390 = sshll.u32 %s369, 4
          %s391 = int_to_ptr.vmem [resolvable:$true] %s390
          %393 = dma.vmem_to_hbm [thread:$0]  %s391, 256, %s388, %s366
        $region36: #{tpu_custom_call.1} parent=27 // pred_fallthru
          _
        // Predicated region
        $region37: #{tpu_custom_call.1} parent=27 // pred_check
          %p394 = pneg %p126
        $region38: #{tpu_custom_call.1} parent=27 // pred_check_branch
          %396 = sbr.rel (%p394) target = $region40
        $region39: #{tpu_custom_call.1} parent=27 // pred_region
          _
        $region40: #{tpu_custom_call.1} parent=27 // pred_fallthru
          _
        // Predicated region
        $region41: #{tpu_custom_call.1} parent=27 // pred_check
          %p397 = pneg %p152
        $region42: #{tpu_custom_call.1} parent=27 // pred_check_branch
          %399 = sbr.rel (%p397) target = $region44
        $region43: #{tpu_custom_call.1} parent=27 // pred_region
          _
        $region44: #{tpu_custom_call.1} parent=27 // pred_fallthru
          _
      $region28: #{tpu_custom_call.1} parent=5 // pred_fallthru
        _
      %p400 = scmp.le.s32.totalorder 2, %s14
      // Predicated region
      $region45: #{tpu_custom_call.1} parent=5 // pred_check
        %p401 = pneg %p400
      $region46: #{tpu_custom_call.1} parent=5 // pred_check_branch
        %403 = sbr.rel (%p401) target = $region48
      $region47: #{tpu_custom_call.1} parent=5 // pred_region
        %s404 = ssub.s32 %s14, 2
        // Predicated region
        $region49: #{tpu_custom_call.1} parent=47 // pred_check
          %p405 = pneg %p106
        $region50: #{tpu_custom_call.1} parent=47 // pred_check_branch
          %407 = sbr.rel (%p405) target = $region52
        $region51: #{tpu_custom_call.1} parent=47 // pred_region
          %s408 = sand.u32 %s91, 1
          %s409 = scalar_lea.sflag [#allocation3], %s408
          %s410 = sand.u32 %s91, 1
          %s411 = smul.addr %s410, 16
          %s412 = scalar_lea.vmem [#allocation2], %s411
          %413 = dma.done %s409, 256
        $region52: #{tpu_custom_call.1} parent=47 // pred_fallthru
          _
        // Predicated region
        $region53: #{tpu_custom_call.1} parent=47 // pred_check
          %p414 = pneg %p132
        $region54: #{tpu_custom_call.1} parent=47 // pred_check_branch
          %416 = sbr.rel (%p414) target = $region56
        $region55: #{tpu_custom_call.1} parent=47 // pred_region
          %p417 = scmp.lt.s32.totalorder %s25, 1
          %s418 = scalar_select %p417, %s25, 1
          %s419 = smul.addr %s418, 8
          %s420 = scalar_lea.vmem %s3, %s419
        $region56: #{tpu_custom_call.1} parent=47 // pred_fallthru
          _
        // Predicated region
        $region57: #{tpu_custom_call.1} parent=47 // pred_check
          %p421 = pneg %p158
        $region58: #{tpu_custom_call.1} parent=47 // pred_check_branch
          %423 = sbr.rel (%p421) target = $region60
        $region59: #{tpu_custom_call.1} parent=47 // pred_region
          %p424 = scmp.lt.s32.totalorder %s25, 1
          %s425 = scalar_select %p424, %s25, 1
          %s426 = smul.addr %s425, 8
          %s427 = scalar_lea.vmem %s4, %s426
        $region60: #{tpu_custom_call.1} parent=47 // pred_fallthru
          _
      $region48: #{tpu_custom_call.1} parent=5 // pred_fallthru
        _
    $region6: #{tpu_custom_call.1} parent=1 // loop_footer
      %s18 = sadd.s32 1, %s14
    $region7: #{tpu_custom_call.1} parent=1 // loop_footer_branch
      %13 = sbr.rel target = $region3
    $region8: #{tpu_custom_call.1} parent=1 // loop_exit
      _
    %428 = vsyncpa [#allocation3], 1
    %s429 = scalar_lea.sflag [#allocation3], 1
    %430 = vsyncpa %s429, 1

</llo_original>
